<compile_context>
chip_gen: v7x
topology: tpu7x:2x2x1
jax: 0.10.0
libtpu: 0.0.40
codegen_flags: <defaults>
</compile_context>

<pallas_src>
import jax
import jax.numpy as jnp
from jax.experimental import pallas as pl
from jax.experimental.pallas import tpu as pltpu


def _tree_rnn_kernel(x_ref, w_ref, b_ref, bn_ref, out_ref):
    """One tree per grid step: (1,S,H) slab -> (1,1,H) encoded vector."""
    _, S, H = x_ref.shape
    x = x_ref[0].astype(jnp.float32)                    # (S, H)

    # ---- Hoisted, fused parameters (loaded once, live in vregs) ----
    w_i = w_ref[0:H, :]                                 # (H, 3H)  [Wir|Wiz|Win]
    w_h = w_ref[H:2 * H, :]                             # (H, 3H)  [Whr|Whz|Whn]
    b_i = b_ref[0:1, :]                                 # (1, 3H)
    b_h = b_ref[1:2, :]                                 # (1, 3H)
    gamma = bn_ref[0:1, :]                              # (1, H)
    beta = bn_ref[1:2, :]                               # (1, H)

    # ---- BatchNorm1d (training-mode biased batch stats over the seq dim) ----
    # The module only applies BN when seq_len > 1; S is static, decide at trace time.
    if S > 1:
        mean = jnp.mean(x, axis=0, keepdims=True)
        var = jnp.mean((x - mean) ** 2, axis=0, keepdims=True)
        x = (x - mean) * jax.lax.rsqrt(var + 1e-5) * gamma + beta

    # ---- Fused GRU input projection for ALL timesteps: one MXU matmul ----
    gi = jnp.dot(x, w_i, preferred_element_type=jnp.float32) + b_i   # (S, 3H)

    # ---- Serial GRU recurrence (fully unrolled, S static) + running sum ----
    h = jnp.zeros((1, H), jnp.float32)
    acc = jnp.zeros((1, H), jnp.float32)
    for t in range(S):
        gx = gi[t:t + 1, :]                                           # static row slice
        gh = jnp.dot(h, w_h, preferred_element_type=jnp.float32) + b_h  # one matmul/step
        r = jax.nn.sigmoid(gx[:, 0:H] + gh[:, 0:H])
        z = jax.nn.sigmoid(gx[:, H:2 * H] + gh[:, H:2 * H])
        n = jnp.tanh(gx[:, 2 * H:3 * H] + r * gh[:, 2 * H:3 * H])
        h = (1.0 - z) * n + z * h
        acc = acc + h

    # 'mean' squeeze over the sequence.
    out_ref[...] = (acc * (1.0 / S)).reshape(1, 1, H).astype(out_ref.dtype)


@jax.jit
def tree_rnn_encoder_forward_batched(xs, params):
    """xs: (N, S, H) — N independent trees; each is the module's (1, S, H) input.

    Returns (N, H). Weights are packed host-side into 3 slabs and stay
    VMEM-resident across the (parallel) tree grid axis.
    """
    N, S, H = xs.shape

    w_packed = jnp.concatenate([
        jnp.concatenate([params["w_ir"], params["w_iz"], params["w_in"]], axis=1),
        jnp.concatenate([params["w_hr"], params["w_hz"], params["w_hn"]], axis=1),
    ], axis=0)                                                        # (2H, 3H)
    b_packed = jnp.concatenate([
        jnp.concatenate([params["b_ir"], params["b_iz"], params["b_in"]], axis=1),
        jnp.concatenate([params["b_hr"], params["b_hz"], params["b_hn"]], axis=1),
    ], axis=0)                                                        # (2, 3H)
    bn_packed = jnp.concatenate([params["gamma"], params["beta"]], axis=0)  # (2, H)

    out = pl.pallas_call(
        _tree_rnn_kernel,
        out_shape=jax.ShapeDtypeStruct((N, 1, H), jnp.float32),
        grid=(N,),
        in_specs=[
            pl.BlockSpec((1, S, H), lambda n: (n, 0, 0)),        # per-tree input
            pl.BlockSpec((2 * H, 3 * H), lambda n: (0, 0)),      # weights: resident
            pl.BlockSpec((2, 3 * H), lambda n: (0, 0)),          # biases:  resident
            pl.BlockSpec((2, H), lambda n: (0, 0)),              # BN gamma/beta
        ],
        out_specs=pl.BlockSpec((1, 1, H), lambda n: (n, 0, 0)),
        compiler_params=pltpu.CompilerParams(
            dimension_semantics=("parallel",)),   # shards trees across TCs on v7x
    )(xs, w_packed, b_packed, bn_packed)
    return out[:, 0, :]


def tree_rnn_encoder_forward(x, params):
    """Module-faithful call: x is (1, S, H) with batch == 1. Returns (1, H)."""
    B, S, H = x.shape
    assert B == 1, "Currently we only consider batch 1 case"
    return tree_rnn_encoder_forward_batched(x, params)


def reference_forward(x, params):
    """Pure-JAX reference matching PyTorch BatchNorm1d(train) + GRU + mean."""
    xb = x[0]
    mean = xb.mean(axis=0, keepdims=True)
    var = ((xb - mean) ** 2).mean(axis=0, keepdims=True)
    xn = (xb - mean) / jnp.sqrt(var + 1e-5) * params["gamma"] + params["beta"]

    S, H = xn.shape
    h = jnp.zeros((1, H), jnp.float32)
    outs = []
    for t in range(S):
        xt = xn[t:t + 1, :]
        r = jax.nn.sigmoid(xt @ params["w_ir"] + params["b_ir"]
                           + h @ params["w_hr"] + params["b_hr"])
        z = jax.nn.sigmoid(xt @ params["w_iz"] + params["b_iz"]
                           + h @ params["w_hz"] + params["b_hz"])
        n = jnp.tanh(xt @ params["w_in"] + params["b_in"]
                     + r * (h @ params["w_hn"] + params["b_hn"]))
        h = (1.0 - z) * n + z * h
        outs.append(h)
    y1 = jnp.concatenate(outs, axis=0)            # (S, H)
    return jnp.mean(y1, axis=0, keepdims=True)    # (1, H)


def init_params(key, hidden_size):
    """Deterministic synthetic init (GRU-style uniform, BN gamma~1 / beta~0)."""
    H = hidden_size
    bound = 1.0 / jnp.sqrt(jnp.float32(H))
    names = ["w_ir", "w_iz", "w_in", "w_hr", "w_hz", "w_hn",
             "b_ir", "b_iz", "b_in", "b_hr", "b_hz", "b_hn",
             "gamma", "beta"]
    keys = jax.random.split(key, len(names))
    params = {}
    for k, name in zip(keys, names):
        if name.startswith("w_"):
            # stored pre-transposed for right-multiplication: (H_in, H_out)
            params[name] = jax.random.uniform(k, (H, H), jnp.float32, -bound, bound)
        elif name.startswith("b_"):
            params[name] = jax.random.uniform(k, (1, H), jnp.float32, -bound, bound)
        elif name == "gamma":
            params[name] = jnp.ones((1, H), jnp.float32) \
                + 0.01 * jax.random.normal(k, (1, H), jnp.float32)
        else:  # beta
            params[name] = 0.01 * jax.random.normal(k, (1, H), jnp.float32)
    return params


if __name__ == "__main__":
    key = jax.random.PRNGKey(0)
    k_x, k_p = jax.random.split(key)

    n_trees, seq_len, hidden = 4, 8, 32   # each tree: batch=1 per the module's assert
    xs = jax.random.normal(k_x, (n_trees, seq_len, hidden), jnp.float32)
    params = init_params(k_p, hidden)

    # Module-faithful single-tree call (batch == 1).
    y_single = jax.block_until_ready(tree_rnn_encoder_forward(xs[0:1], params))
    y_ref0 = reference_forward(xs[0:1], params)
    assert y_single.shape == (1, hidden)
    assert jnp.allclose(y_single, y_ref0, rtol=1e-4, atol=1e-4), (
        f"max abs diff {jnp.max(jnp.abs(y_single - y_ref0))}")

    # Batched call: N independent trees in one pallas_call (amortized DMA/launch,
    # weights VMEM-resident, parallel tree axis).
    y_batch = jax.block_until_ready(tree_rnn_encoder_forward_batched(xs, params))
    y_ref = jnp.concatenate(
        [reference_forward(xs[i:i + 1], params) for i in range(n_trees)], axis=0)
    assert y_batch.shape == (n_trees, hidden)
    assert jnp.allclose(y_batch, y_ref, rtol=1e-4, atol=1e-4), (
        f"max abs diff {jnp.max(jnp.abs(y_batch - y_ref))}")

    print("KERNEL_OK")
</pallas_src>

<mosaic_0001>
module attributes {stable_mosaic.version = 11 : i64} {
  func.func @_tree_rnn_kernel(%arg0: i32, %arg1: memref<1x8x32xf32, #tpu.memory_space<vmem>>, %arg2: memref<64x96xf32, #tpu.memory_space<vmem>>, %arg3: memref<2x96xf32, #tpu.memory_space<vmem>>, %arg4: memref<2x32xf32, #tpu.memory_space<vmem>>, %arg5: memref<1x1x32xf32, #tpu.memory_space<vmem>>) attributes {dimension_semantics = [#tpu.dimension_semantics<parallel>], iteration_bounds = array<i64: 1>, scalar_prefetch = 0 : i64, scratch_operands = 0 : i64, tpu.core_type = #tpu.core_type<tc>, window_params = [{transform_indices = @transform_0, window_bounds = array<i64: 1, 8, 32>}, {pipeline_mode = #tpu.pipeline_mode<synchronous>, transform_indices = @transform_1, window_bounds = array<i64: 64, 96>}, {pipeline_mode = #tpu.pipeline_mode<synchronous>, transform_indices = @transform_2, window_bounds = array<i64: 2, 96>}, {pipeline_mode = #tpu.pipeline_mode<synchronous>, transform_indices = @transform_3, window_bounds = array<i64: 2, 32>}, {transform_indices = @transform_4, window_bounds = array<i64: 1, 1, 32>}]} {
    %c0 = arith.constant 0 : index
    %c0_0 = arith.constant 0 : index
    %c0_1 = arith.constant 0 : index
    %0 = vector.load %arg1[%c0, %c0_0, %c0_1] : memref<1x8x32xf32, #tpu.memory_space<vmem>>, vector<1x8x32xf32>
    %1 = vector.shape_cast %0 : vector<1x8x32xf32> to vector<8x32xf32>
    %c0_2 = arith.constant 0 : index
    %c0_3 = arith.constant 0 : index
    %2 = vector.load %arg2[%c0_2, %c0_3] : memref<64x96xf32, #tpu.memory_space<vmem>>, vector<32x96xf32>
    %c32 = arith.constant 32 : index
    %c0_4 = arith.constant 0 : index
    %3 = vector.load %arg2[%c32, %c0_4] : memref<64x96xf32, #tpu.memory_space<vmem>>, vector<32x96xf32>
    %c0_5 = arith.constant 0 : index
    %c0_6 = arith.constant 0 : index
    %4 = vector.load %arg3[%c0_5, %c0_6] : memref<2x96xf32, #tpu.memory_space<vmem>>, vector<1x96xf32>
    %c1 = arith.constant 1 : index
    %c0_7 = arith.constant 0 : index
    %5 = vector.load %arg3[%c1, %c0_7] : memref<2x96xf32, #tpu.memory_space<vmem>>, vector<1x96xf32>
    %c0_8 = arith.constant 0 : index
    %c0_9 = arith.constant 0 : index
    %6 = vector.load %arg4[%c0_8, %c0_9] : memref<2x32xf32, #tpu.memory_space<vmem>>, vector<1x32xf32>
    %c1_10 = arith.constant 1 : index
    %c0_11 = arith.constant 0 : index
    %7 = vector.load %arg4[%c1_10, %c0_11] : memref<2x32xf32, #tpu.memory_space<vmem>>, vector<1x32xf32>
    %cst = arith.constant dense<0.000000e+00> : vector<32xf32>
    %8 = vector.multi_reduction <add>, %1, %cst [0] : vector<8x32xf32> to vector<32xf32>
    %9 = vector.shape_cast %8 : vector<32xf32> to vector<1x32xf32>
    %cst_12 = arith.constant 8.000000e+00 : f32
    %10 = vector.broadcast %cst_12 : f32 to vector<1x32xf32>
    %11 = arith.divf %9, %10 : vector<1x32xf32>
    %12 = vector.broadcast %11 : vector<1x32xf32> to vector<8x32xf32>
    %13 = arith.subf %1, %12 : vector<8x32xf32>
    %14 = arith.mulf %13, %13 : vector<8x32xf32>
    %cst_13 = arith.constant dense<0.000000e+00> : vector<32xf32>
    %15 = vector.multi_reduction <add>, %14, %cst_13 [0] : vector<8x32xf32> to vector<32xf32>
    %16 = vector.shape_cast %15 : vector<32xf32> to vector<1x32xf32>
    %cst_14 = arith.constant 8.000000e+00 : f32
    %17 = vector.broadcast %cst_14 : f32 to vector<1x32xf32>
    %18 = arith.divf %16, %17 : vector<1x32xf32>
    %19 = vector.broadcast %11 : vector<1x32xf32> to vector<8x32xf32>
    %20 = arith.subf %1, %19 : vector<8x32xf32>
    %cst_15 = arith.constant 9.99999974E-6 : f32
    %21 = vector.broadcast %cst_15 : f32 to vector<1x32xf32>
    %22 = arith.addf %18, %21 : vector<1x32xf32>
    %23 = math.rsqrt %22 : vector<1x32xf32>
    %24 = vector.broadcast %23 : vector<1x32xf32> to vector<8x32xf32>
    %25 = arith.mulf %20, %24 : vector<8x32xf32>
    %26 = vector.broadcast %6 : vector<1x32xf32> to vector<8x32xf32>
    %27 = arith.mulf %25, %26 : vector<8x32xf32>
    %28 = vector.broadcast %7 : vector<1x32xf32> to vector<8x32xf32>
    %29 = arith.addf %27, %28 : vector<8x32xf32>
    %cst_16 = arith.constant dense<0.000000e+00> : vector<8x96xf32>
    %30 = tpu.matmul %29, %2, %cst_16 {dimension_numbers = #tpu.dot_dimension_numbers<[1], [0], [0], [1], [0, 0, 1, 1], [], []>} : vector<8x32xf32>, vector<32x96xf32>, vector<8x96xf32> -> vector<8x96xf32>
    %31 = vector.broadcast %4 : vector<1x96xf32> to vector<8x96xf32>
    %32 = arith.addf %30, %31 : vector<8x96xf32>
    %cst_17 = arith.constant 0.000000e+00 : f32
    %33 = vector.broadcast %cst_17 : f32 to vector<1x32xf32>
    %cst_18 = arith.constant 0.000000e+00 : f32
    %34 = vector.broadcast %cst_18 : f32 to vector<1x32xf32>
    %35 = vector.extract_strided_slice %32 {offsets = [0, 0], sizes = [1, 96], strides = [1, 1]} : vector<8x96xf32> to vector<1x96xf32>
    %cst_19 = arith.constant dense<0.000000e+00> : vector<1x96xf32>
    %36 = tpu.matmul %33, %3, %cst_19 {dimension_numbers = #tpu.dot_dimension_numbers<[1], [0], [0], [1], [0, 0, 1, 1], [], []>} : vector<1x32xf32>, vector<32x96xf32>, vector<1x96xf32> -> vector<1x96xf32>
    %37 = arith.addf %36, %5 : vector<1x96xf32>
    %38 = vector.extract_strided_slice %35 {offsets = [0, 0], sizes = [1, 32], strides = [1, 1]} : vector<1x96xf32> to vector<1x32xf32>
    %39 = vector.extract_strided_slice %37 {offsets = [0, 0], sizes = [1, 32], strides = [1, 1]} : vector<1x96xf32> to vector<1x32xf32>
    %40 = arith.addf %38, %39 : vector<1x32xf32>
    %41 = arith.negf %40 : vector<1x32xf32>
    %42 = math.exp %41 : vector<1x32xf32>
    %cst_20 = arith.constant 1.000000e+00 : f32
    %43 = vector.broadcast %cst_20 : f32 to vector<1x32xf32>
    %44 = arith.addf %43, %42 : vector<1x32xf32>
    %45 = arith.divf %43, %44 : vector<1x32xf32>
    %46 = vector.extract_strided_slice %35 {offsets = [0, 32], sizes = [1, 32], strides = [1, 1]} : vector<1x96xf32> to vector<1x32xf32>
    %47 = vector.extract_strided_slice %37 {offsets = [0, 32], sizes = [1, 32], strides = [1, 1]} : vector<1x96xf32> to vector<1x32xf32>
    %48 = arith.addf %46, %47 : vector<1x32xf32>
    %49 = arith.negf %48 : vector<1x32xf32>
    %50 = math.exp %49 : vector<1x32xf32>
    %cst_21 = arith.constant 1.000000e+00 : f32
    %51 = vector.broadcast %cst_21 : f32 to vector<1x32xf32>
    %52 = arith.addf %51, %50 : vector<1x32xf32>
    %53 = arith.divf %51, %52 : vector<1x32xf32>
    %54 = vector.extract_strided_slice %35 {offsets = [0, 64], sizes = [1, 32], strides = [1, 1]} : vector<1x96xf32> to vector<1x32xf32>
    %55 = vector.extract_strided_slice %37 {offsets = [0, 64], sizes = [1, 32], strides = [1, 1]} : vector<1x96xf32> to vector<1x32xf32>
    %56 = arith.mulf %45, %55 : vector<1x32xf32>
    %57 = arith.addf %54, %56 : vector<1x32xf32>
    %58 = math.tanh %57 : vector<1x32xf32>
    %cst_22 = arith.constant 1.000000e+00 : f32
    %59 = vector.broadcast %cst_22 : f32 to vector<1x32xf32>
    %60 = arith.subf %59, %53 : vector<1x32xf32>
    %61 = arith.mulf %60, %58 : vector<1x32xf32>
    %62 = arith.mulf %53, %33 : vector<1x32xf32>
    %63 = arith.addf %61, %62 : vector<1x32xf32>
    %64 = arith.addf %34, %63 : vector<1x32xf32>
    %65 = vector.extract_strided_slice %32 {offsets = [1, 0], sizes = [1, 96], strides = [1, 1]} : vector<8x96xf32> to vector<1x96xf32>
    %cst_23 = arith.constant dense<0.000000e+00> : vector<1x96xf32>
    %66 = tpu.matmul %63, %3, %cst_23 {dimension_numbers = #tpu.dot_dimension_numbers<[1], [0], [0], [1], [0, 0, 1, 1], [], []>} : vector<1x32xf32>, vector<32x96xf32>, vector<1x96xf32> -> vector<1x96xf32>
    %67 = arith.addf %66, %5 : vector<1x96xf32>
    %68 = vector.extract_strided_slice %65 {offsets = [0, 0], sizes = [1, 32], strides = [1, 1]} : vector<1x96xf32> to vector<1x32xf32>
    %69 = vector.extract_strided_slice %67 {offsets = [0, 0], sizes = [1, 32], strides = [1, 1]} : vector<1x96xf32> to vector<1x32xf32>
    %70 = arith.addf %68, %69 : vector<1x32xf32>
    %71 = arith.negf %70 : vector<1x32xf32>
    %72 = math.exp %71 : vector<1x32xf32>
    %cst_24 = arith.constant 1.000000e+00 : f32
    %73 = vector.broadcast %cst_24 : f32 to vector<1x32xf32>
    %74 = arith.addf %73, %72 : vector<1x32xf32>
    %75 = arith.divf %73, %74 : vector<1x32xf32>
    %76 = vector.extract_strided_slice %65 {offsets = [0, 32], sizes = [1, 32], strides = [1, 1]} : vector<1x96xf32> to vector<1x32xf32>
    %77 = vector.extract_strided_slice %67 {offsets = [0, 32], sizes = [1, 32], strides = [1, 1]} : vector<1x96xf32> to vector<1x32xf32>
    %78 = arith.addf %76, %77 : vector<1x32xf32>
    %79 = arith.negf %78 : vector<1x32xf32>
    %80 = math.exp %79 : vector<1x32xf32>
    %cst_25 = arith.constant 1.000000e+00 : f32
    %81 = vector.broadcast %cst_25 : f32 to vector<1x32xf32>
    %82 = arith.addf %81, %80 : vector<1x32xf32>
    %83 = arith.divf %81, %82 : vector<1x32xf32>
    %84 = vector.extract_strided_slice %65 {offsets = [0, 64], sizes = [1, 32], strides = [1, 1]} : vector<1x96xf32> to vector<1x32xf32>
    %85 = vector.extract_strided_slice %67 {offsets = [0, 64], sizes = [1, 32], strides = [1, 1]} : vector<1x96xf32> to vector<1x32xf32>
    %86 = arith.mulf %75, %85 : vector<1x32xf32>
    %87 = arith.addf %84, %86 : vector<1x32xf32>
    %88 = math.tanh %87 : vector<1x32xf32>
    %cst_26 = arith.constant 1.000000e+00 : f32
    %89 = vector.broadcast %cst_26 : f32 to vector<1x32xf32>
    %90 = arith.subf %89, %83 : vector<1x32xf32>
    %91 = arith.mulf %90, %88 : vector<1x32xf32>
    %92 = arith.mulf %83, %63 : vector<1x32xf32>
    %93 = arith.addf %91, %92 : vector<1x32xf32>
    %94 = arith.addf %64, %93 : vector<1x32xf32>
    %95 = vector.extract_strided_slice %32 {offsets = [2, 0], sizes = [1, 96], strides = [1, 1]} : vector<8x96xf32> to vector<1x96xf32>
    %cst_27 = arith.constant dense<0.000000e+00> : vector<1x96xf32>
    %96 = tpu.matmul %93, %3, %cst_27 {dimension_numbers = #tpu.dot_dimension_numbers<[1], [0], [0], [1], [0, 0, 1, 1], [], []>} : vector<1x32xf32>, vector<32x96xf32>, vector<1x96xf32> -> vector<1x96xf32>
    %97 = arith.addf %96, %5 : vector<1x96xf32>
    %98 = vector.extract_strided_slice %95 {offsets = [0, 0], sizes = [1, 32], strides = [1, 1]} : vector<1x96xf32> to vector<1x32xf32>
    %99 = vector.extract_strided_slice %97 {offsets = [0, 0], sizes = [1, 32], strides = [1, 1]} : vector<1x96xf32> to vector<1x32xf32>
    %100 = arith.addf %98, %99 : vector<1x32xf32>
    %101 = arith.negf %100 : vector<1x32xf32>
    %102 = math.exp %101 : vector<1x32xf32>
    %cst_28 = arith.constant 1.000000e+00 : f32
    %103 = vector.broadcast %cst_28 : f32 to vector<1x32xf32>
    %104 = arith.addf %103, %102 : vector<1x32xf32>
    %105 = arith.divf %103, %104 : vector<1x32xf32>
    %106 = vector.extract_strided_slice %95 {offsets = [0, 32], sizes = [1, 32], strides = [1, 1]} : vector<1x96xf32> to vector<1x32xf32>
    %107 = vector.extract_strided_slice %97 {offsets = [0, 32], sizes = [1, 32], strides = [1, 1]} : vector<1x96xf32> to vector<1x32xf32>
    %108 = arith.addf %106, %107 : vector<1x32xf32>
    %109 = arith.negf %108 : vector<1x32xf32>
    %110 = math.exp %109 : vector<1x32xf32>
    %cst_29 = arith.constant 1.000000e+00 : f32
    %111 = vector.broadcast %cst_29 : f32 to vector<1x32xf32>
    %112 = arith.addf %111, %110 : vector<1x32xf32>
    %113 = arith.divf %111, %112 : vector<1x32xf32>
    %114 = vector.extract_strided_slice %95 {offsets = [0, 64], sizes = [1, 32], strides = [1, 1]} : vector<1x96xf32> to vector<1x32xf32>
    %115 = vector.extract_strided_slice %97 {offsets = [0, 64], sizes = [1, 32], strides = [1, 1]} : vector<1x96xf32> to vector<1x32xf32>
    %116 = arith.mulf %105, %115 : vector<1x32xf32>
    %117 = arith.addf %114, %116 : vector<1x32xf32>
    %118 = math.tanh %117 : vector<1x32xf32>
    %cst_30 = arith.constant 1.000000e+00 : f32
    %119 = vector.broadcast %cst_30 : f32 to vector<1x32xf32>
    %120 = arith.subf %119, %113 : vector<1x32xf32>
    %121 = arith.mulf %120, %118 : vector<1x32xf32>
    %122 = arith.mulf %113, %93 : vector<1x32xf32>
    %123 = arith.addf %121, %122 : vector<1x32xf32>
    %124 = arith.addf %94, %123 : vector<1x32xf32>
    %125 = vector.extract_strided_slice %32 {offsets = [3, 0], sizes = [1, 96], strides = [1, 1]} : vector<8x96xf32> to vector<1x96xf32>
    %cst_31 = arith.constant dense<0.000000e+00> : vector<1x96xf32>
    %126 = tpu.matmul %123, %3, %cst_31 {dimension_numbers = #tpu.dot_dimension_numbers<[1], [0], [0], [1], [0, 0, 1, 1], [], []>} : vector<1x32xf32>, vector<32x96xf32>, vector<1x96xf32> -> vector<1x96xf32>
    %127 = arith.addf %126, %5 : vector<1x96xf32>
    %128 = vector.extract_strided_slice %125 {offsets = [0, 0], sizes = [1, 32], strides = [1, 1]} : vector<1x96xf32> to vector<1x32xf32>
    %129 = vector.extract_strided_slice %127 {offsets = [0, 0], sizes = [1, 32], strides = [1, 1]} : vector<1x96xf32> to vector<1x32xf32>
    %130 = arith.addf %128, %129 : vector<1x32xf32>
    %131 = arith.negf %130 : vector<1x32xf32>
    %132 = math.exp %131 : vector<1x32xf32>
    %cst_32 = arith.constant 1.000000e+00 : f32
    %133 = vector.broadcast %cst_32 : f32 to vector<1x32xf32>
    %134 = arith.addf %133, %132 : vector<1x32xf32>
    %135 = arith.divf %133, %134 : vector<1x32xf32>
    %136 = vector.extract_strided_slice %125 {offsets = [0, 32], sizes = [1, 32], strides = [1, 1]} : vector<1x96xf32> to vector<1x32xf32>
    %137 = vector.extract_strided_slice %127 {offsets = [0, 32], sizes = [1, 32], strides = [1, 1]} : vector<1x96xf32> to vector<1x32xf32>
    %138 = arith.addf %136, %137 : vector<1x32xf32>
    %139 = arith.negf %138 : vector<1x32xf32>
    %140 = math.exp %139 : vector<1x32xf32>
    %cst_33 = arith.constant 1.000000e+00 : f32
    %141 = vector.broadcast %cst_33 : f32 to vector<1x32xf32>
    %142 = arith.addf %141, %140 : vector<1x32xf32>
    %143 = arith.divf %141, %142 : vector<1x32xf32>
    %144 = vector.extract_strided_slice %125 {offsets = [0, 64], sizes = [1, 32], strides = [1, 1]} : vector<1x96xf32> to vector<1x32xf32>
    %145 = vector.extract_strided_slice %127 {offsets = [0, 64], sizes = [1, 32], strides = [1, 1]} : vector<1x96xf32> to vector<1x32xf32>
    %146 = arith.mulf %135, %145 : vector<1x32xf32>
    %147 = arith.addf %144, %146 : vector<1x32xf32>
    %148 = math.tanh %147 : vector<1x32xf32>
    %cst_34 = arith.constant 1.000000e+00 : f32
    %149 = vector.broadcast %cst_34 : f32 to vector<1x32xf32>
    %150 = arith.subf %149, %143 : vector<1x32xf32>
    %151 = arith.mulf %150, %148 : vector<1x32xf32>
    %152 = arith.mulf %143, %123 : vector<1x32xf32>
    %153 = arith.addf %151, %152 : vector<1x32xf32>
    %154 = arith.addf %124, %153 : vector<1x32xf32>
    %155 = vector.extract_strided_slice %32 {offsets = [4, 0], sizes = [1, 96], strides = [1, 1]} : vector<8x96xf32> to vector<1x96xf32>
    %cst_35 = arith.constant dense<0.000000e+00> : vector<1x96xf32>
    %156 = tpu.matmul %153, %3, %cst_35 {dimension_numbers = #tpu.dot_dimension_numbers<[1], [0], [0], [1], [0, 0, 1, 1], [], []>} : vector<1x32xf32>, vector<32x96xf32>, vector<1x96xf32> -> vector<1x96xf32>
    %157 = arith.addf %156, %5 : vector<1x96xf32>
    %158 = vector.extract_strided_slice %155 {offsets = [0, 0], sizes = [1, 32], strides = [1, 1]} : vector<1x96xf32> to vector<1x32xf32>
    %159 = vector.extract_strided_slice %157 {offsets = [0, 0], sizes = [1, 32], strides = [1, 1]} : vector<1x96xf32> to vector<1x32xf32>
    %160 = arith.addf %158, %159 : vector<1x32xf32>
    %161 = arith.negf %160 : vector<1x32xf32>
    %162 = math.exp %161 : vector<1x32xf32>
    %cst_36 = arith.constant 1.000000e+00 : f32
    %163 = vector.broadcast %cst_36 : f32 to vector<1x32xf32>
    %164 = arith.addf %163, %162 : vector<1x32xf32>
    %165 = arith.divf %163, %164 : vector<1x32xf32>
    %166 = vector.extract_strided_slice %155 {offsets = [0, 32], sizes = [1, 32], strides = [1, 1]} : vector<1x96xf32> to vector<1x32xf32>
    %167 = vector.extract_strided_slice %157 {offsets = [0, 32], sizes = [1, 32], strides = [1, 1]} : vector<1x96xf32> to vector<1x32xf32>
    %168 = arith.addf %166, %167 : vector<1x32xf32>
    %169 = arith.negf %168 : vector<1x32xf32>
    %170 = math.exp %169 : vector<1x32xf32>
    %cst_37 = arith.constant 1.000000e+00 : f32
    %171 = vector.broadcast %cst_37 : f32 to vector<1x32xf32>
    %172 = arith.addf %171, %170 : vector<1x32xf32>
    %173 = arith.divf %171, %172 : vector<1x32xf32>
    %174 = vector.extract_strided_slice %155 {offsets = [0, 64], sizes = [1, 32], strides = [1, 1]} : vector<1x96xf32> to vector<1x32xf32>
    %175 = vector.extract_strided_slice %157 {offsets = [0, 64], sizes = [1, 32], strides = [1, 1]} : vector<1x96xf32> to vector<1x32xf32>
    %176 = arith.mulf %165, %175 : vector<1x32xf32>
    %177 = arith.addf %174, %176 : vector<1x32xf32>
    %178 = math.tanh %177 : vector<1x32xf32>
    %cst_38 = arith.constant 1.000000e+00 : f32
    %179 = vector.broadcast %cst_38 : f32 to vector<1x32xf32>
    %180 = arith.subf %179, %173 : vector<1x32xf32>
    %181 = arith.mulf %180, %178 : vector<1x32xf32>
    %182 = arith.mulf %173, %153 : vector<1x32xf32>
    %183 = arith.addf %181, %182 : vector<1x32xf32>
    %184 = arith.addf %154, %183 : vector<1x32xf32>
    %185 = vector.extract_strided_slice %32 {offsets = [5, 0], sizes = [1, 96], strides = [1, 1]} : vector<8x96xf32> to vector<1x96xf32>
    %cst_39 = arith.constant dense<0.000000e+00> : vector<1x96xf32>
    %186 = tpu.matmul %183, %3, %cst_39 {dimension_numbers = #tpu.dot_dimension_numbers<[1], [0], [0], [1], [0, 0, 1, 1], [], []>} : vector<1x32xf32>, vector<32x96xf32>, vector<1x96xf32> -> vector<1x96xf32>
    %187 = arith.addf %186, %5 : vector<1x96xf32>
    %188 = vector.extract_strided_slice %185 {offsets = [0, 0], sizes = [1, 32], strides = [1, 1]} : vector<1x96xf32> to vector<1x32xf32>
    %189 = vector.extract_strided_slice %187 {offsets = [0, 0], sizes = [1, 32], strides = [1, 1]} : vector<1x96xf32> to vector<1x32xf32>
    %190 = arith.addf %188, %189 : vector<1x32xf32>
    %191 = arith.negf %190 : vector<1x32xf32>
    %192 = math.exp %191 : vector<1x32xf32>
    %cst_40 = arith.constant 1.000000e+00 : f32
    %193 = vector.broadcast %cst_40 : f32 to vector<1x32xf32>
    %194 = arith.addf %193, %192 : vector<1x32xf32>
    %195 = arith.divf %193, %194 : vector<1x32xf32>
    %196 = vector.extract_strided_slice %185 {offsets = [0, 32], sizes = [1, 32], strides = [1, 1]} : vector<1x96xf32> to vector<1x32xf32>
    %197 = vector.extract_strided_slice %187 {offsets = [0, 32], sizes = [1, 32], strides = [1, 1]} : vector<1x96xf32> to vector<1x32xf32>
    %198 = arith.addf %196, %197 : vector<1x32xf32>
    %199 = arith.negf %198 : vector<1x32xf32>
    %200 = math.exp %199 : vector<1x32xf32>
    %cst_41 = arith.constant 1.000000e+00 : f32
    %201 = vector.broadcast %cst_41 : f32 to vector<1x32xf32>
    %202 = arith.addf %201, %200 : vector<1x32xf32>
    %203 = arith.divf %201, %202 : vector<1x32xf32>
    %204 = vector.extract_strided_slice %185 {offsets = [0, 64], sizes = [1, 32], strides = [1, 1]} : vector<1x96xf32> to vector<1x32xf32>
    %205 = vector.extract_strided_slice %187 {offsets = [0, 64], sizes = [1, 32], strides = [1, 1]} : vector<1x96xf32> to vector<1x32xf32>
    %206 = arith.mulf %195, %205 : vector<1x32xf32>
    %207 = arith.addf %204, %206 : vector<1x32xf32>
    %208 = math.tanh %207 : vector<1x32xf32>
    %cst_42 = arith.constant 1.000000e+00 : f32
    %209 = vector.broadcast %cst_42 : f32 to vector<1x32xf32>
    %210 = arith.subf %209, %203 : vector<1x32xf32>
    %211 = arith.mulf %210, %208 : vector<1x32xf32>
    %212 = arith.mulf %203, %183 : vector<1x32xf32>
    %213 = arith.addf %211, %212 : vector<1x32xf32>
    %214 = arith.addf %184, %213 : vector<1x32xf32>
    %215 = vector.extract_strided_slice %32 {offsets = [6, 0], sizes = [1, 96], strides = [1, 1]} : vector<8x96xf32> to vector<1x96xf32>
    %cst_43 = arith.constant dense<0.000000e+00> : vector<1x96xf32>
    %216 = tpu.matmul %213, %3, %cst_43 {dimension_numbers = #tpu.dot_dimension_numbers<[1], [0], [0], [1], [0, 0, 1, 1], [], []>} : vector<1x32xf32>, vector<32x96xf32>, vector<1x96xf32> -> vector<1x96xf32>
    %217 = arith.addf %216, %5 : vector<1x96xf32>
    %218 = vector.extract_strided_slice %215 {offsets = [0, 0], sizes = [1, 32], strides = [1, 1]} : vector<1x96xf32> to vector<1x32xf32>
    %219 = vector.extract_strided_slice %217 {offsets = [0, 0], sizes = [1, 32], strides = [1, 1]} : vector<1x96xf32> to vector<1x32xf32>
    %220 = arith.addf %218, %219 : vector<1x32xf32>
    %221 = arith.negf %220 : vector<1x32xf32>
    %222 = math.exp %221 : vector<1x32xf32>
    %cst_44 = arith.constant 1.000000e+00 : f32
    %223 = vector.broadcast %cst_44 : f32 to vector<1x32xf32>
    %224 = arith.addf %223, %222 : vector<1x32xf32>
    %225 = arith.divf %223, %224 : vector<1x32xf32>
    %226 = vector.extract_strided_slice %215 {offsets = [0, 32], sizes = [1, 32], strides = [1, 1]} : vector<1x96xf32> to vector<1x32xf32>
    %227 = vector.extract_strided_slice %217 {offsets = [0, 32], sizes = [1, 32], strides = [1, 1]} : vector<1x96xf32> to vector<1x32xf32>
    %228 = arith.addf %226, %227 : vector<1x32xf32>
    %229 = arith.negf %228 : vector<1x32xf32>
    %230 = math.exp %229 : vector<1x32xf32>
    %cst_45 = arith.constant 1.000000e+00 : f32
    %231 = vector.broadcast %cst_45 : f32 to vector<1x32xf32>
    %232 = arith.addf %231, %230 : vector<1x32xf32>
    %233 = arith.divf %231, %232 : vector<1x32xf32>
    %234 = vector.extract_strided_slice %215 {offsets = [0, 64], sizes = [1, 32], strides = [1, 1]} : vector<1x96xf32> to vector<1x32xf32>
    %235 = vector.extract_strided_slice %217 {offsets = [0, 64], sizes = [1, 32], strides = [1, 1]} : vector<1x96xf32> to vector<1x32xf32>
    %236 = arith.mulf %225, %235 : vector<1x32xf32>
    %237 = arith.addf %234, %236 : vector<1x32xf32>
    %238 = math.tanh %237 : vector<1x32xf32>
    %cst_46 = arith.constant 1.000000e+00 : f32
    %239 = vector.broadcast %cst_46 : f32 to vector<1x32xf32>
    %240 = arith.subf %239, %233 : vector<1x32xf32>
    %241 = arith.mulf %240, %238 : vector<1x32xf32>
    %242 = arith.mulf %233, %213 : vector<1x32xf32>
    %243 = arith.addf %241, %242 : vector<1x32xf32>
    %244 = arith.addf %214, %243 : vector<1x32xf32>
    %245 = vector.extract_strided_slice %32 {offsets = [7, 0], sizes = [1, 96], strides = [1, 1]} : vector<8x96xf32> to vector<1x96xf32>
    %cst_47 = arith.constant dense<0.000000e+00> : vector<1x96xf32>
    %246 = tpu.matmul %243, %3, %cst_47 {dimension_numbers = #tpu.dot_dimension_numbers<[1], [0], [0], [1], [0, 0, 1, 1], [], []>} : vector<1x32xf32>, vector<32x96xf32>, vector<1x96xf32> -> vector<1x96xf32>
    %247 = arith.addf %246, %5 : vector<1x96xf32>
    %248 = vector.extract_strided_slice %245 {offsets = [0, 0], sizes = [1, 32], strides = [1, 1]} : vector<1x96xf32> to vector<1x32xf32>
    %249 = vector.extract_strided_slice %247 {offsets = [0, 0], sizes = [1, 32], strides = [1, 1]} : vector<1x96xf32> to vector<1x32xf32>
    %250 = arith.addf %248, %249 : vector<1x32xf32>
    %251 = arith.negf %250 : vector<1x32xf32>
    %252 = math.exp %251 : vector<1x32xf32>
    %cst_48 = arith.constant 1.000000e+00 : f32
    %253 = vector.broadcast %cst_48 : f32 to vector<1x32xf32>
    %254 = arith.addf %253, %252 : vector<1x32xf32>
    %255 = arith.divf %253, %254 : vector<1x32xf32>
    %256 = vector.extract_strided_slice %245 {offsets = [0, 32], sizes = [1, 32], strides = [1, 1]} : vector<1x96xf32> to vector<1x32xf32>
    %257 = vector.extract_strided_slice %247 {offsets = [0, 32], sizes = [1, 32], strides = [1, 1]} : vector<1x96xf32> to vector<1x32xf32>
    %258 = arith.addf %256, %257 : vector<1x32xf32>
    %259 = arith.negf %258 : vector<1x32xf32>
    %260 = math.exp %259 : vector<1x32xf32>
    %cst_49 = arith.constant 1.000000e+00 : f32
    %261 = vector.broadcast %cst_49 : f32 to vector<1x32xf32>
    %262 = arith.addf %261, %260 : vector<1x32xf32>
    %263 = arith.divf %261, %262 : vector<1x32xf32>
    %264 = vector.extract_strided_slice %245 {offsets = [0, 64], sizes = [1, 32], strides = [1, 1]} : vector<1x96xf32> to vector<1x32xf32>
    %265 = vector.extract_strided_slice %247 {offsets = [0, 64], sizes = [1, 32], strides = [1, 1]} : vector<1x96xf32> to vector<1x32xf32>
    %266 = arith.mulf %255, %265 : vector<1x32xf32>
    %267 = arith.addf %264, %266 : vector<1x32xf32>
    %268 = math.tanh %267 : vector<1x32xf32>
    %cst_50 = arith.constant 1.000000e+00 : f32
    %269 = vector.broadcast %cst_50 : f32 to vector<1x32xf32>
    %270 = arith.subf %269, %263 : vector<1x32xf32>
    %271 = arith.mulf %270, %268 : vector<1x32xf32>
    %272 = arith.mulf %263, %243 : vector<1x32xf32>
    %273 = arith.addf %271, %272 : vector<1x32xf32>
    %274 = arith.addf %244, %273 : vector<1x32xf32>
    %cst_51 = arith.constant 1.250000e-01 : f32
    %275 = vector.broadcast %cst_51 : f32 to vector<1x32xf32>
    %276 = arith.mulf %274, %275 : vector<1x32xf32>
    %277 = vector.shape_cast %276 : vector<1x32xf32> to vector<1x1x32xf32>
    %c0_52 = arith.constant 0 : index
    %c0_53 = arith.constant 0 : index
    %c0_54 = arith.constant 0 : index
    %278 = vector.load %arg5[%c0_52, %c0_53, %c0_54] : memref<1x1x32xf32, #tpu.memory_space<vmem>>, vector<1x1x32xf32>
    tpu.vector_store %arg5[%c0_52, %c0_53, %c0_54], %277 {strides = array<i32>} : memref<1x1x32xf32, #tpu.memory_space<vmem>>, vector<1x1x32xf32>,
    return
  }
  func.func @transform_0(%arg0: i32) -> (i32, i32, i32) {
    %c0_i32 = arith.constant 0 : i32
    %c0_i32_0 = arith.constant 0 : i32
    %c0_i32_1 = arith.constant 0 : i32
    return %arg0, %c0_i32, %c0_i32_0 : i32, i32, i32
  }
  func.func @transform_1(%arg0: i32) -> (i32, i32) {
    %c0_i32 = arith.constant 0 : i32
    %c0_i32_0 = arith.constant 0 : i32
    %c0_i32_1 = arith.constant 0 : i32
    return %c0_i32, %c0_i32_0 : i32, i32
  }
  func.func @transform_2(%arg0: i32) -> (i32, i32) {
    %c0_i32 = arith.constant 0 : i32
    %c0_i32_0 = arith.constant 0 : i32
    %c0_i32_1 = arith.constant 0 : i32
    return %c0_i32, %c0_i32_0 : i32, i32
  }
  func.func @transform_3(%arg0: i32) -> (i32, i32) {
    %c0_i32 = arith.constant 0 : i32
    %c0_i32_0 = arith.constant 0 : i32
    %c0_i32_1 = arith.constant 0 : i32
    return %c0_i32, %c0_i32_0 : i32, i32
  }
  func.func @transform_4(%arg0: i32) -> (i32, i32, i32) {
    %c0_i32 = arith.constant 0 : i32
    %c0_i32_0 = arith.constant 0 : i32
    %c0_i32_1 = arith.constant 0 : i32
    return %arg0, %c0_i32, %c0_i32_0 : i32, i32, i32
  }
}

</mosaic_0001>

<llo_original>
// kernel: tree_rnn_encoder_forward_batched.1
$region0: #{tree_rnn_encoder_forward_batched.1}
  #allocation0 [shape = 'u32[]', space=smem, size = 0x4, offset = 0x4, fixed_abs, tag = 'smem constant byte address 0x4 - core index']
  #allocation1 [shape = 'u32[144,128]{1,0:T(1,128)}', space=vmem, size = 0x12000, scoped, tag = 'internal scratch']
  %s0 = inlined_call_operand.vmem [shape: f32[1,8,32], index: 0, kind: input, shape index: {}]
  %s1 = inlined_call_operand.vmem [shape: f32[64,96], index: 1, kind: input, shape index: {}]
  %s2 = inlined_call_operand.vmem [shape: f32[2,96], index: 2, kind: input, shape index: {}]
  %s3 = inlined_call_operand.vmem [shape: f32[2,32], index: 3, kind: input, shape index: {}]
  %s4 = inlined_call_operand.hbm [shape: f32[1,1,32], index: 4, kind: output, shape index: {}]
  %s5 = sld [smem:[#allocation0]]
  $region26: #{tree_rnn_encoder_forward_batched.1} parent=0
    _
  %s7 = ssub.s32 1, %s5
  %s8 = scalar_select 0, %s7, %s5
  $region1: #{tree_rnn_encoder_forward_batched.1} parent=0
    #allocation2 [shape = 'u8[512]{0}', space=vmem, size = 0x400, scoped, tag = 'output window, operand 0, single buffered']
    #allocation3 [shape = 's32[1]{0}', space=sflag, size = 0x4, scoped, tag = 'scoped memory for tree_rnn_encoder_forward_batched.1']
    %9 = vsyncpa [#allocation3], 0
    // Predicated region
    $region2: #{tree_rnn_encoder_forward_batched.1} parent=1 // pred_check
      _
    $region3: #{tree_rnn_encoder_forward_batched.1} parent=1 // pred_check_branch
      %11 = sbr.rel (0) target = $region5
    $region4: #{tree_rnn_encoder_forward_batched.1} parent=1 // pred_region
      _
    $region5: #{tree_rnn_encoder_forward_batched.1} parent=1 // pred_fallthru
      _
    // Predicated region
    $region6: #{tree_rnn_encoder_forward_batched.1} parent=1 // pred_check
      _
    $region7: #{tree_rnn_encoder_forward_batched.1} parent=1 // pred_check_branch
      %13 = sbr.rel (0) target = $region9
    $region8: #{tree_rnn_encoder_forward_batched.1} parent=1 // pred_region
      _
    $region9: #{tree_rnn_encoder_forward_batched.1} parent=1 // pred_fallthru
      _
    // Predicated region
    $region10: #{tree_rnn_encoder_forward_batched.1} parent=1 // pred_check
      _
    $region11: #{tree_rnn_encoder_forward_batched.1} parent=1 // pred_check_branch
      %15 = sbr.rel (0) target = $region13
    $region12: #{tree_rnn_encoder_forward_batched.1} parent=1 // pred_region
      _
    $region13: #{tree_rnn_encoder_forward_batched.1} parent=1 // pred_fallthru
      _
    // Predicated region
    $region14: #{tree_rnn_encoder_forward_batched.1} parent=1 // pred_check
      _
    $region15: #{tree_rnn_encoder_forward_batched.1} parent=1 // pred_check_branch
      %17 = sbr.rel (0) target = $region17
    $region16: #{tree_rnn_encoder_forward_batched.1} parent=1 // pred_region
      _
    $region17: #{tree_rnn_encoder_forward_batched.1} parent=1 // pred_fallthru
      _
    %v18 = vld [vmem:[%s0] sm:$0xff]
    %v19 = vld [vmem:[%s1] sm:$0xff]
    %v20 = vld [vmem:[%s1 + $0x8] sm:$0xff]
    %v21 = vld [vmem:[%s1 + $0x10] sm:$0xff]
    %v22 = vld [vmem:[%s1 + $0x18] sm:$0xff]
    %v23 = vld [vmem:[%s1 + $0x20] sm:$0xff]
    %v24 = vld [vmem:[%s1 + $0x28] sm:$0xff]
    %v25 = vld [vmem:[%s1 + $0x30] sm:$0xff]
    %v26 = vld [vmem:[%s1 + $0x38] sm:$0xff]
    %v27 = vld [vmem:[%s2] sm:$0x1]
    %v28 = vld [vmem:[%s2 + $0x1] sm:$0x1]
    %v29 = vld [vmem:[%s3] sm:$0x1]
    %v30 = vld [vmem:[%s3 + $0x1] sm:$0x1]
    %vm31 = vcmask 261120
    %v32 = vsel %vm31, %v18, 0.0
    %v33 = vrot.slane %v32, 4
    %v34 = vadd.f32 %v32, %v33
    %v35 = vrot.slane %v34, 2
    %v36 = vadd.f32 %v34, %v35
    %v37 = vrot.slane %v36, 1
    %v38 = vadd.f32 %v36, %v37
    %v39 = vrcp.pop 8.0
    %v40 = vmul.f32 %v38, %v39
    %v41 = vsub.f32 %v18, %v40
    %v42 = vmul.f32 %v41, %v41
    %v43 = vsel %vm31, %v42, 0.0
    %v44 = vrot.slane %v43, 4
    %v45 = vadd.f32 %v43, %v44
    %v46 = vrot.slane %v45, 2
    %v47 = vadd.f32 %v45, %v46
    %v48 = vrot.slane %v47, 1
    %v49 = vadd.f32 %v47, %v48
    %v50 = vmul.f32 %v49, %v39
    %v51 = vadd.f32 %v50, 1e-05
    %v52 = vrsqrt.pop %v51
    %v53 = vmul.f32 %v41, %v52
    %v54 = vlaneseq
    %v55 = vshrl.u32 %v54, 7
    %v56 = vsub.s32 0, %v55
    %v57 = vrot.slane %v29, %v56
    %v58 = vmul.f32 %v53, %v57
    %v59 = vlaneseq
    %v60 = vshrl.u32 %v59, 7
    %v61 = vsub.s32 0, %v60
    %v62 = vrot.slane %v30, %v61
    %v63 = vadd.f32 %v58, %v62
    %v64 = vlaneseq
    %v65 = vshrl.u32 %v64, 7
    %v66 = vsub.s32 0, %v65
    %v67 = vrot.slane %v27, %v66
    %v69 = vsel %vm31, %v63, 0
    %71 = vmatprep.subr.mxu0 0.0
    %72 = vmatpush1.msra.mxu0 %v19
    %73 = vmatprep.subr.mxu0 0.0
    %74 = vmatpush1.msra.mxu0 %v20
    %75 = vmatprep.subr.mxu0 0.0
    %76 = vmatpush1.msra.mxu0 %v21
    %77 = vmatprep.subr.mxu0 0.0
    %78 = vmatpush1.msra.mxu0 %v22
    %79 = vmatprep.subr.mxu0 0.0
    %80 = vmatpush1.msra.mxu0 0.0
    %81 = vmatprep.subr.mxu0 0.0
    %82 = vmatpush1.msra.mxu0 0.0
    %83 = vmatprep.subr.mxu0 0.0
    %84 = vmatpush1.msra.mxu0 0.0
    %85 = vmatprep.subr.mxu0 0.0
    %86 = vmatpush1.msra.mxu0 0.0
    %87 = vmatprep.subr.mxu0 0.0
    %88 = vmatpush1.msra.mxu0 0.0
    %89 = vmatprep.subr.mxu0 0.0
    %90 = vmatpush1.msra.mxu0 0.0
    %91 = vmatprep.subr.mxu0 0.0
    %92 = vmatpush1.msra.mxu0 0.0
    %93 = vmatprep.subr.mxu0 0.0
    %94 = vmatpush1.msra.mxu0 0.0
    %95 = vmatprep.subr.mxu0 0.0
    %96 = vmatpush1.msra.mxu0 0.0
    %97 = vmatprep.subr.mxu0 0.0
    %98 = vmatpush1.msra.mxu0 0.0
    %99 = vmatprep.subr.mxu0 0.0
    %100 = vmatpush1.msra.mxu0 0.0
    %101 = vmatprep.subr.mxu0 0.0
    %102 = vmatpush1.msra.mxu0 0.0
    %103 = vmatprep.subr.mxu0 0.0
    %104 = vmatpush1.msra.mxu0 0.0
    %105 = vmatprep.subr.mxu0 0.0
    %106 = vmatpush1.msra.mxu0 0.0
    %107 = vmatprep.subr.mxu0 0.0
    %108 = vmatpush1.msra.mxu0 0.0
    %109 = vmatprep.subr.mxu0 0.0
    %110 = vmatpush1.msra.mxu0 0.0
    %111 = vmatprep.subr.mxu0 0.0
    %112 = vmatpush1.msra.mxu0 0.0
    %113 = vmatprep.subr.mxu0 0.0
    %114 = vmatpush1.msra.mxu0 0.0
    %115 = vmatprep.subr.mxu0 0.0
    %116 = vmatpush1.msra.mxu0 0.0
    %117 = vmatprep.subr.mxu0 0.0
    %118 = vmatpush1.msra.mxu0 0.0
    %119 = vmatprep.subr.mxu0 0.0
    %120 = vmatpush1.msra.mxu0 0.0
    %121 = vmatprep.subr.mxu0 0.0
    %122 = vmatpush1.msra.mxu0 0.0
    %123 = vmatprep.subr.mxu0 0.0
    %124 = vmatpush1.msra.mxu0 0.0
    %125 = vmatprep.subr.mxu0 0.0
    %126 = vmatpush1.msra.mxu0 0.0
    %127 = vmatprep.subr.mxu0 0.0
    %128 = vmatpush1.msra.mxu0 0.0
    %129 = vmatprep.subr.mxu0 0.0
    %130 = vmatpush1.msra.mxu0 0.0
    %131 = vmatprep.subr.mxu0 0.0
    %132 = vmatpush1.msra.mxu0 0.0
    %133 = vmatprep.subr.mxu0 0.0
    %134 = vmatpush1.msra.mxu0 0.0
    %135 = vmatprep.mubr.f32.mxu0 0.0
    %136 = vmatmul.mubr.f32.gmra.mrb[0].mxu0 %v69
    %v137 = vpop.f32.mrb[0].mxu0
    %v138 = vadd.f32 %v67, %v137
    %v139 = vpop.f32.mrb[0].mxu0
    %140 = vdwg.mxu0
    %v142 = vsel %vm31, 0.0, 0
    %144 = vmatprep.subr.mxu0 0.0
    %145 = vmatpush1.msra.mxu0 %v23
    %146 = vmatprep.subr.mxu0 0.0
    %147 = vmatpush1.msra.mxu0 %v24
    %148 = vmatprep.subr.mxu0 0.0
    %149 = vmatpush1.msra.mxu0 %v25
    %150 = vmatprep.subr.mxu0 0.0
    %151 = vmatpush1.msra.mxu0 %v26
    %152 = vmatprep.subr.mxu0 0.0
    %153 = vmatpush1.msra.mxu0 0.0
    %154 = vmatprep.subr.mxu0 0.0
    %155 = vmatpush1.msra.mxu0 0.0
    %156 = vmatprep.subr.mxu0 0.0
    %157 = vmatpush1.msra.mxu0 0.0
    %158 = vmatprep.subr.mxu0 0.0
    %159 = vmatpush1.msra.mxu0 0.0
    %160 = vmatprep.subr.mxu0 0.0
    %161 = vmatpush1.msra.mxu0 0.0
    %162 = vmatprep.subr.mxu0 0.0
    %163 = vmatpush1.msra.mxu0 0.0
    %164 = vmatprep.subr.mxu0 0.0
    %165 = vmatpush1.msra.mxu0 0.0
    %166 = vmatprep.subr.mxu0 0.0
    %167 = vmatpush1.msra.mxu0 0.0
    %168 = vmatprep.subr.mxu0 0.0
    %169 = vmatpush1.msra.mxu0 0.0
    %170 = vmatprep.subr.mxu0 0.0
    %171 = vmatpush1.msra.mxu0 0.0
    %172 = vmatprep.subr.mxu0 0.0
    %173 = vmatpush1.msra.mxu0 0.0
    %174 = vmatprep.subr.mxu0 0.0
    %175 = vmatpush1.msra.mxu0 0.0
    %176 = vmatprep.subr.mxu0 0.0
    %177 = vmatpush1.msra.mxu0 0.0
    %178 = vmatprep.subr.mxu0 0.0
    %179 = vmatpush1.msra.mxu0 0.0
    %180 = vmatprep.subr.mxu0 0.0
    %181 = vmatpush1.msra.mxu0 0.0
    %182 = vmatprep.subr.mxu0 0.0
    %183 = vmatpush1.msra.mxu0 0.0
    %184 = vmatprep.subr.mxu0 0.0
    %185 = vmatpush1.msra.mxu0 0.0
    %186 = vmatprep.subr.mxu0 0.0
    %187 = vmatpush1.msra.mxu0 0.0
    %188 = vmatprep.subr.mxu0 0.0
    %189 = vmatpush1.msra.mxu0 0.0
    %190 = vmatprep.subr.mxu0 0.0
    %191 = vmatpush1.msra.mxu0 0.0
    %192 = vmatprep.subr.mxu0 0.0
    %193 = vmatpush1.msra.mxu0 0.0
    %194 = vmatprep.subr.mxu0 0.0
    %195 = vmatpush1.msra.mxu0 0.0
    %196 = vmatprep.subr.mxu0 0.0
    %197 = vmatpush1.msra.mxu0 0.0
    %198 = vmatprep.subr.mxu0 0.0
    %199 = vmatpush1.msra.mxu0 0.0
    %200 = vmatprep.subr.mxu0 0.0
    %201 = vmatpush1.msra.mxu0 0.0
    %202 = vmatprep.subr.mxu0 0.0
    %203 = vmatpush1.msra.mxu0 0.0
    %204 = vmatprep.subr.mxu0 0.0
    %205 = vmatpush1.msra.mxu0 0.0
    %206 = vmatprep.subr.mxu0 0.0
    %207 = vmatpush1.msra.mxu0 0.0
    %208 = vmatprep.mubr.f32.mxu0 0.0
    %209 = vmatmul.mubr.f32.gmra.mrb[0].mxu0 %v142
    %v210 = vpop.f32.mrb[0].mxu0
    %v211 = vadd.f32 %v28, %v210
    %v212 = vpop.f32.mrb[0].mxu0
    %213 = vdwg.mxu0
    %v214 = vadd.f32 %v138, %v211
    %v215 = vxor.u32 %v214, 2147483648
    %v216 = vmul.f32 %v215, 1.442695
    %v217 = vpow.pop %v216
    %v218 = vadd.f32 %v217, 1.0
    %v219 = vrcp.pop %v218
    %v220 = vmul.f32 1.0, %v219
    %222 = vrot.lane.b32.xlu0 %v211, 64
    %v223 = vpop.permute.xlu0 %222
    %v225 = vmul.f32 %v220, %v223
    %227 = vrot.lane.b32.xlu0 %v225, 64
    %v228 = vpop.permute.xlu0 %227
    %v230 = vadd.f32 %v138, %v228
    %v231 = vtanh.pop %v230
    %v232 = vsub.f32 1.0, %v220
    %234 = vrot.lane.b32.xlu0 %v231, 96
    %v235 = vpop.permute.xlu0 %234
    %v237 = vmul.f32 %v232, %v235
    %v238 = vmul.f32 %v220, 0.0
    %v239 = vadd.f32 %v237, %v238
    %v240 = vadd.f32 %v239, 0.0
    %242 = vrot.lane.b32.xlu0 %v239, 96
    %v243 = vpop.permute.xlu0 %242
    %v244 = vsel %vm31, %v243, 0
    %246 = vmatprep.subr.mxu0 0.0
    %247 = vmatpush1.msra.mxu0 %v23
    %248 = vmatprep.subr.mxu0 0.0
    %249 = vmatpush1.msra.mxu0 %v24
    %250 = vmatprep.subr.mxu0 0.0
    %251 = vmatpush1.msra.mxu0 %v25
    %252 = vmatprep.subr.mxu0 0.0
    %253 = vmatpush1.msra.mxu0 %v26
    %254 = vmatprep.subr.mxu0 0.0
    %255 = vmatpush1.msra.mxu0 0.0
    %256 = vmatprep.subr.mxu0 0.0
    %257 = vmatpush1.msra.mxu0 0.0
    %258 = vmatprep.subr.mxu0 0.0
    %259 = vmatpush1.msra.mxu0 0.0
    %260 = vmatprep.subr.mxu0 0.0
    %261 = vmatpush1.msra.mxu0 0.0
    %262 = vmatprep.subr.mxu0 0.0
    %263 = vmatpush1.msra.mxu0 0.0
    %264 = vmatprep.subr.mxu0 0.0
    %265 = vmatpush1.msra.mxu0 0.0
    %266 = vmatprep.subr.mxu0 0.0
    %267 = vmatpush1.msra.mxu0 0.0
    %268 = vmatprep.subr.mxu0 0.0
    %269 = vmatpush1.msra.mxu0 0.0
    %270 = vmatprep.subr.mxu0 0.0
    %271 = vmatpush1.msra.mxu0 0.0
    %272 = vmatprep.subr.mxu0 0.0
    %273 = vmatpush1.msra.mxu0 0.0
    %274 = vmatprep.subr.mxu0 0.0
    %275 = vmatpush1.msra.mxu0 0.0
    %276 = vmatprep.subr.mxu0 0.0
    %277 = vmatpush1.msra.mxu0 0.0
    %278 = vmatprep.subr.mxu0 0.0
    %279 = vmatpush1.msra.mxu0 0.0
    %280 = vmatprep.subr.mxu0 0.0
    %281 = vmatpush1.msra.mxu0 0.0
    %282 = vmatprep.subr.mxu0 0.0
    %283 = vmatpush1.msra.mxu0 0.0
    %284 = vmatprep.subr.mxu0 0.0
    %285 = vmatpush1.msra.mxu0 0.0
    %286 = vmatprep.subr.mxu0 0.0
    %287 = vmatpush1.msra.mxu0 0.0
    %288 = vmatprep.subr.mxu0 0.0
    %289 = vmatpush1.msra.mxu0 0.0
    %290 = vmatprep.subr.mxu0 0.0
    %291 = vmatpush1.msra.mxu0 0.0
    %292 = vmatprep.subr.mxu0 0.0
    %293 = vmatpush1.msra.mxu0 0.0
    %294 = vmatprep.subr.mxu0 0.0
    %295 = vmatpush1.msra.mxu0 0.0
    %296 = vmatprep.subr.mxu0 0.0
    %297 = vmatpush1.msra.mxu0 0.0
    %298 = vmatprep.subr.mxu0 0.0
    %299 = vmatpush1.msra.mxu0 0.0
    %300 = vmatprep.subr.mxu0 0.0
    %301 = vmatpush1.msra.mxu0 0.0
    %302 = vmatprep.subr.mxu0 0.0
    %303 = vmatpush1.msra.mxu0 0.0
    %304 = vmatprep.subr.mxu0 0.0
    %305 = vmatpush1.msra.mxu0 0.0
    %306 = vmatprep.subr.mxu0 0.0
    %307 = vmatpush1.msra.mxu0 0.0
    %308 = vmatprep.subr.mxu0 0.0
    %309 = vmatpush1.msra.mxu0 0.0
    %310 = vmatprep.mubr.f32.mxu0 0.0
    %311 = vmatmul.mubr.f32.gmra.mrb[0].mxu0 %v244
    %v312 = vpop.f32.mrb[0].mxu0
    %v313 = vadd.f32 %v28, %v312
    %v314 = vpop.f32.mrb[0].mxu0
    %315 = vdwg.mxu0
    %v317 = vrot.slane %v313, 7
    %v319 = vadd.f32 %v138, %v317
    %v320 = vxor.u32 %v319, 2147483648
    %v321 = vmul.f32 %v320, 1.442695
    %v322 = vpow.pop %v321
    %v323 = vadd.f32 %v322, 1.0
    %v324 = vrcp.pop %v323
    %v325 = vmul.f32 1.0, %v324
    %326 = vrot.lane.b32.xlu0 %v317, 64
    %v327 = vpop.permute.xlu0 %326
    %v329 = vmul.f32 %v325, %v327
    %331 = vrot.lane.b32.xlu0 %v329, 64
    %v332 = vpop.permute.xlu0 %331
    %v334 = vadd.f32 %v138, %v332
    %v335 = vtanh.pop %v334
    %v336 = vsub.f32 1.0, %v325
    %338 = vrot.lane.b32.xlu0 %v335, 96
    %v339 = vpop.permute.xlu0 %338
    %v341 = vmul.f32 %v336, %v339
    %v342 = vrot.slane %v239, 7
    %v344 = vmul.f32 %v325, %v342
    %v345 = vadd.f32 %v341, %v344
    %v347 = vrot.slane %v345, 1
    %v349 = vadd.f32 %v240, %v347
    %350 = vrot.lane.b32.xlu0 %v347, 96
    %v351 = vpop.permute.xlu0 %350
    %v352 = vsel %vm31, %v351, 0
    %354 = vmatprep.subr.mxu0 0.0
    %355 = vmatpush1.msra.mxu0 %v23
    %356 = vmatprep.subr.mxu0 0.0
    %357 = vmatpush1.msra.mxu0 %v24
    %358 = vmatprep.subr.mxu0 0.0
    %359 = vmatpush1.msra.mxu0 %v25
    %360 = vmatprep.subr.mxu0 0.0
    %361 = vmatpush1.msra.mxu0 %v26
    %362 = vmatprep.subr.mxu0 0.0
    %363 = vmatpush1.msra.mxu0 0.0
    %364 = vmatprep.subr.mxu0 0.0
    %365 = vmatpush1.msra.mxu0 0.0
    %366 = vmatprep.subr.mxu0 0.0
    %367 = vmatpush1.msra.mxu0 0.0
    %368 = vmatprep.subr.mxu0 0.0
    %369 = vmatpush1.msra.mxu0 0.0
    %370 = vmatprep.subr.mxu0 0.0
    %371 = vmatpush1.msra.mxu0 0.0
    %372 = vmatprep.subr.mxu0 0.0
    %373 = vmatpush1.msra.mxu0 0.0
    %374 = vmatprep.subr.mxu0 0.0
    %375 = vmatpush1.msra.mxu0 0.0
    %376 = vmatprep.subr.mxu0 0.0
    %377 = vmatpush1.msra.mxu0 0.0
    %378 = vmatprep.subr.mxu0 0.0
    %379 = vmatpush1.msra.mxu0 0.0
    %380 = vmatprep.subr.mxu0 0.0
    %381 = vmatpush1.msra.mxu0 0.0
    %382 = vmatprep.subr.mxu0 0.0
    %383 = vmatpush1.msra.mxu0 0.0
    %384 = vmatprep.subr.mxu0 0.0
    %385 = vmatpush1.msra.mxu0 0.0
    %386 = vmatprep.subr.mxu0 0.0
    %387 = vmatpush1.msra.mxu0 0.0
    %388 = vmatprep.subr.mxu0 0.0
    %389 = vmatpush1.msra.mxu0 0.0
    %390 = vmatprep.subr.mxu0 0.0
    %391 = vmatpush1.msra.mxu0 0.0
    %392 = vmatprep.subr.mxu0 0.0
    %393 = vmatpush1.msra.mxu0 0.0
    %394 = vmatprep.subr.mxu0 0.0
    %395 = vmatpush1.msra.mxu0 0.0
    %396 = vmatprep.subr.mxu0 0.0
    %397 = vmatpush1.msra.mxu0 0.0
    %398 = vmatprep.subr.mxu0 0.0
    %399 = vmatpush1.msra.mxu0 0.0
    %400 = vmatprep.subr.mxu0 0.0
    %401 = vmatpush1.msra.mxu0 0.0
    %402 = vmatprep.subr.mxu0 0.0
    %403 = vmatpush1.msra.mxu0 0.0
    %404 = vmatprep.subr.mxu0 0.0
    %405 = vmatpush1.msra.mxu0 0.0
    %406 = vmatprep.subr.mxu0 0.0
    %407 = vmatpush1.msra.mxu0 0.0
    %408 = vmatprep.subr.mxu0 0.0
    %409 = vmatpush1.msra.mxu0 0.0
    %410 = vmatprep.subr.mxu0 0.0
    %411 = vmatpush1.msra.mxu0 0.0
    %412 = vmatprep.subr.mxu0 0.0
    %413 = vmatpush1.msra.mxu0 0.0
    %414 = vmatprep.subr.mxu0 0.0
    %415 = vmatpush1.msra.mxu0 0.0
    %416 = vmatprep.subr.mxu0 0.0
    %417 = vmatpush1.msra.mxu0 0.0
    %418 = vmatprep.mubr.f32.mxu0 0.0
    %419 = vmatmul.mubr.f32.gmra.mrb[0].mxu0 %v352
    %v420 = vpop.f32.mrb[0].mxu0
    %v421 = vadd.f32 %v28, %v420
    %v422 = vpop.f32.mrb[0].mxu0
    %423 = vdwg.mxu0
    %v425 = vrot.slane %v421, 6
    %v427 = vadd.f32 %v138, %v425
    %v428 = vxor.u32 %v427, 2147483648
    %v429 = vmul.f32 %v428, 1.442695
    %v430 = vpow.pop %v429
    %v431 = vadd.f32 %v430, 1.0
    %v432 = vrcp.pop %v431
    %v433 = vmul.f32 1.0, %v432
    %434 = vrot.lane.b32.xlu0 %v425, 64
    %v435 = vpop.permute.xlu0 %434
    %v437 = vmul.f32 %v433, %v435
    %439 = vrot.lane.b32.xlu0 %v437, 64
    %v440 = vpop.permute.xlu0 %439
    %v442 = vadd.f32 %v138, %v440
    %v443 = vtanh.pop %v442
    %v444 = vsub.f32 1.0, %v433
    %446 = vrot.lane.b32.xlu0 %v443, 96
    %v447 = vpop.permute.xlu0 %446
    %v449 = vmul.f32 %v444, %v447
    %v450 = vrot.slane %v345, 7
    %v452 = vmul.f32 %v433, %v450
    %v453 = vadd.f32 %v449, %v452
    %v455 = vrot.slane %v453, 2
    %v457 = vadd.f32 %v349, %v455
    %458 = vrot.lane.b32.xlu0 %v455, 96
    %v459 = vpop.permute.xlu0 %458
    %v460 = vsel %vm31, %v459, 0
    %462 = vmatprep.subr.mxu0 0.0
    %463 = vmatpush1.msra.mxu0 %v23
    %464 = vmatprep.subr.mxu0 0.0
    %465 = vmatpush1.msra.mxu0 %v24
    %466 = vmatprep.subr.mxu0 0.0
    %467 = vmatpush1.msra.mxu0 %v25
    %468 = vmatprep.subr.mxu0 0.0
    %469 = vmatpush1.msra.mxu0 %v26
    %470 = vmatprep.subr.mxu0 0.0
    %471 = vmatpush1.msra.mxu0 0.0
    %472 = vmatprep.subr.mxu0 0.0
    %473 = vmatpush1.msra.mxu0 0.0
    %474 = vmatprep.subr.mxu0 0.0
    %475 = vmatpush1.msra.mxu0 0.0
    %476 = vmatprep.subr.mxu0 0.0
    %477 = vmatpush1.msra.mxu0 0.0
    %478 = vmatprep.subr.mxu0 0.0
    %479 = vmatpush1.msra.mxu0 0.0
    %480 = vmatprep.subr.mxu0 0.0
    %481 = vmatpush1.msra.mxu0 0.0
    %482 = vmatprep.subr.mxu0 0.0
    %483 = vmatpush1.msra.mxu0 0.0
    %484 = vmatprep.subr.mxu0 0.0
    %485 = vmatpush1.msra.mxu0 0.0
    %486 = vmatprep.subr.mxu0 0.0
    %487 = vmatpush1.msra.mxu0 0.0
    %488 = vmatprep.subr.mxu0 0.0
    %489 = vmatpush1.msra.mxu0 0.0
    %490 = vmatprep.subr.mxu0 0.0
    %491 = vmatpush1.msra.mxu0 0.0
    %492 = vmatprep.subr.mxu0 0.0
    %493 = vmatpush1.msra.mxu0 0.0
    %494 = vmatprep.subr.mxu0 0.0
    %495 = vmatpush1.msra.mxu0 0.0
    %496 = vmatprep.subr.mxu0 0.0
    %497 = vmatpush1.msra.mxu0 0.0
    %498 = vmatprep.subr.mxu0 0.0
    %499 = vmatpush1.msra.mxu0 0.0
    %500 = vmatprep.subr.mxu0 0.0
    %501 = vmatpush1.msra.mxu0 0.0
    %502 = vmatprep.subr.mxu0 0.0
    %503 = vmatpush1.msra.mxu0 0.0
    %504 = vmatprep.subr.mxu0 0.0
    %505 = vmatpush1.msra.mxu0 0.0
    %506 = vmatprep.subr.mxu0 0.0
    %507 = vmatpush1.msra.mxu0 0.0
    %508 = vmatprep.subr.mxu0 0.0
    %509 = vmatpush1.msra.mxu0 0.0
    %510 = vmatprep.subr.mxu0 0.0
    %511 = vmatpush1.msra.mxu0 0.0
    %512 = vmatprep.subr.mxu0 0.0
    %513 = vmatpush1.msra.mxu0 0.0
    %514 = vmatprep.subr.mxu0 0.0
    %515 = vmatpush1.msra.mxu0 0.0
    %516 = vmatprep.subr.mxu0 0.0
    %517 = vmatpush1.msra.mxu0 0.0
    %518 = vmatprep.subr.mxu0 0.0
    %519 = vmatpush1.msra.mxu0 0.0
    %520 = vmatprep.subr.mxu0 0.0
    %521 = vmatpush1.msra.mxu0 0.0
    %522 = vmatprep.subr.mxu0 0.0
    %523 = vmatpush1.msra.mxu0 0.0
    %524 = vmatprep.subr.mxu0 0.0
    %525 = vmatpush1.msra.mxu0 0.0
    %526 = vmatprep.mubr.f32.mxu0 0.0
    %527 = vmatmul.mubr.f32.gmra.mrb[0].mxu0 %v460
    %v528 = vpop.f32.mrb[0].mxu0
    %v529 = vadd.f32 %v28, %v528
    %v530 = vpop.f32.mrb[0].mxu0
    %531 = vdwg.mxu0
    %v533 = vrot.slane %v529, 5
    %v535 = vadd.f32 %v138, %v533
    %v536 = vxor.u32 %v535, 2147483648
    %v537 = vmul.f32 %v536, 1.442695
    %v538 = vpow.pop %v537
    %v539 = vadd.f32 %v538, 1.0
    %v540 = vrcp.pop %v539
    %v541 = vmul.f32 1.0, %v540
    %542 = vrot.lane.b32.xlu0 %v533, 64
    %v543 = vpop.permute.xlu0 %542
    %v545 = vmul.f32 %v541, %v543
    %547 = vrot.lane.b32.xlu0 %v545, 64
    %v548 = vpop.permute.xlu0 %547
    %v550 = vadd.f32 %v138, %v548
    %v551 = vtanh.pop %v550
    %v552 = vsub.f32 1.0, %v541
    %554 = vrot.lane.b32.xlu0 %v551, 96
    %v555 = vpop.permute.xlu0 %554
    %v557 = vmul.f32 %v552, %v555
    %v558 = vrot.slane %v453, 7
    %v560 = vmul.f32 %v541, %v558
    %v561 = vadd.f32 %v557, %v560
    %v563 = vrot.slane %v561, 3
    %v565 = vadd.f32 %v457, %v563
    %566 = vrot.lane.b32.xlu0 %v563, 96
    %v567 = vpop.permute.xlu0 %566
    %v568 = vsel %vm31, %v567, 0
    %570 = vmatprep.subr.mxu0 0.0
    %571 = vmatpush1.msra.mxu0 %v23
    %572 = vmatprep.subr.mxu0 0.0
    %573 = vmatpush1.msra.mxu0 %v24
    %574 = vmatprep.subr.mxu0 0.0
    %575 = vmatpush1.msra.mxu0 %v25
    %576 = vmatprep.subr.mxu0 0.0
    %577 = vmatpush1.msra.mxu0 %v26
    %578 = vmatprep.subr.mxu0 0.0
    %579 = vmatpush1.msra.mxu0 0.0
    %580 = vmatprep.subr.mxu0 0.0
    %581 = vmatpush1.msra.mxu0 0.0
    %582 = vmatprep.subr.mxu0 0.0
    %583 = vmatpush1.msra.mxu0 0.0
    %584 = vmatprep.subr.mxu0 0.0
    %585 = vmatpush1.msra.mxu0 0.0
    %586 = vmatprep.subr.mxu0 0.0
    %587 = vmatpush1.msra.mxu0 0.0
    %588 = vmatprep.subr.mxu0 0.0
    %589 = vmatpush1.msra.mxu0 0.0
    %590 = vmatprep.subr.mxu0 0.0
    %591 = vmatpush1.msra.mxu0 0.0
    %592 = vmatprep.subr.mxu0 0.0
    %593 = vmatpush1.msra.mxu0 0.0
    %594 = vmatprep.subr.mxu0 0.0
    %595 = vmatpush1.msra.mxu0 0.0
    %596 = vmatprep.subr.mxu0 0.0
    %597 = vmatpush1.msra.mxu0 0.0
    %598 = vmatprep.subr.mxu0 0.0
    %599 = vmatpush1.msra.mxu0 0.0
    %600 = vmatprep.subr.mxu0 0.0
    %601 = vmatpush1.msra.mxu0 0.0
    %602 = vmatprep.subr.mxu0 0.0
    %603 = vmatpush1.msra.mxu0 0.0
    %604 = vmatprep.subr.mxu0 0.0
    %605 = vmatpush1.msra.mxu0 0.0
    %606 = vmatprep.subr.mxu0 0.0
    %607 = vmatpush1.msra.mxu0 0.0
    %608 = vmatprep.subr.mxu0 0.0
    %609 = vmatpush1.msra.mxu0 0.0
    %610 = vmatprep.subr.mxu0 0.0
    %611 = vmatpush1.msra.mxu0 0.0
    %612 = vmatprep.subr.mxu0 0.0
    %613 = vmatpush1.msra.mxu0 0.0
    %614 = vmatprep.subr.mxu0 0.0
    %615 = vmatpush1.msra.mxu0 0.0
    %616 = vmatprep.subr.mxu0 0.0
    %617 = vmatpush1.msra.mxu0 0.0
    %618 = vmatprep.subr.mxu0 0.0
    %619 = vmatpush1.msra.mxu0 0.0
    %620 = vmatprep.subr.mxu0 0.0
    %621 = vmatpush1.msra.mxu0 0.0
    %622 = vmatprep.subr.mxu0 0.0
    %623 = vmatpush1.msra.mxu0 0.0
    %624 = vmatprep.subr.mxu0 0.0
    %625 = vmatpush1.msra.mxu0 0.0
    %626 = vmatprep.subr.mxu0 0.0
    %627 = vmatpush1.msra.mxu0 0.0
    %628 = vmatprep.subr.mxu0 0.0
    %629 = vmatpush1.msra.mxu0 0.0
    %630 = vmatprep.subr.mxu0 0.0
    %631 = vmatpush1.msra.mxu0 0.0
    %632 = vmatprep.subr.mxu0 0.0
    %633 = vmatpush1.msra.mxu0 0.0
    %634 = vmatprep.mubr.f32.mxu0 0.0
    %635 = vmatmul.mubr.f32.gmra.mrb[0].mxu0 %v568
    %v636 = vpop.f32.mrb[0].mxu0
    %v637 = vadd.f32 %v28, %v636
    %v638 = vpop.f32.mrb[0].mxu0
    %639 = vdwg.mxu0
    %v641 = vrot.slane %v637, 4
    %v643 = vadd.f32 %v138, %v641
    %v644 = vxor.u32 %v643, 2147483648
    %v645 = vmul.f32 %v644, 1.442695
    %v646 = vpow.pop %v645
    %v647 = vadd.f32 %v646, 1.0
    %v648 = vrcp.pop %v647
    %v649 = vmul.f32 1.0, %v648
    %650 = vrot.lane.b32.xlu0 %v641, 64
    %v651 = vpop.permute.xlu0 %650
    %v653 = vmul.f32 %v649, %v651
    %655 = vrot.lane.b32.xlu0 %v653, 64
    %v656 = vpop.permute.xlu0 %655
    %v658 = vadd.f32 %v138, %v656
    %v659 = vtanh.pop %v658
    %v660 = vsub.f32 1.0, %v649
    %662 = vrot.lane.b32.xlu0 %v659, 96
    %v663 = vpop.permute.xlu0 %662
    %v665 = vmul.f32 %v660, %v663
    %v666 = vrot.slane %v561, 7
    %v668 = vmul.f32 %v649, %v666
    %v669 = vadd.f32 %v665, %v668
    %v671 = vrot.slane %v669, 4
    %v673 = vadd.f32 %v565, %v671
    %674 = vrot.lane.b32.xlu0 %v671, 96
    %v675 = vpop.permute.xlu0 %674
    %v676 = vsel %vm31, %v675, 0
    %678 = vmatprep.subr.mxu0 0.0
    %679 = vmatpush1.msra.mxu0 %v23
    %680 = vmatprep.subr.mxu0 0.0
    %681 = vmatpush1.msra.mxu0 %v24
    %682 = vmatprep.subr.mxu0 0.0
    %683 = vmatpush1.msra.mxu0 %v25
    %684 = vmatprep.subr.mxu0 0.0
    %685 = vmatpush1.msra.mxu0 %v26
    %686 = vmatprep.subr.mxu0 0.0
    %687 = vmatpush1.msra.mxu0 0.0
    %688 = vmatprep.subr.mxu0 0.0
    %689 = vmatpush1.msra.mxu0 0.0
    %690 = vmatprep.subr.mxu0 0.0
    %691 = vmatpush1.msra.mxu0 0.0
    %692 = vmatprep.subr.mxu0 0.0
    %693 = vmatpush1.msra.mxu0 0.0
    %694 = vmatprep.subr.mxu0 0.0
    %695 = vmatpush1.msra.mxu0 0.0
    %696 = vmatprep.subr.mxu0 0.0
    %697 = vmatpush1.msra.mxu0 0.0
    %698 = vmatprep.subr.mxu0 0.0
    %699 = vmatpush1.msra.mxu0 0.0
    %700 = vmatprep.subr.mxu0 0.0
    %701 = vmatpush1.msra.mxu0 0.0
    %702 = vmatprep.subr.mxu0 0.0
    %703 = vmatpush1.msra.mxu0 0.0
    %704 = vmatprep.subr.mxu0 0.0
    %705 = vmatpush1.msra.mxu0 0.0
    %706 = vmatprep.subr.mxu0 0.0
    %707 = vmatpush1.msra.mxu0 0.0
    %708 = vmatprep.subr.mxu0 0.0
    %709 = vmatpush1.msra.mxu0 0.0
    %710 = vmatprep.subr.mxu0 0.0
    %711 = vmatpush1.msra.mxu0 0.0
    %712 = vmatprep.subr.mxu0 0.0
    %713 = vmatpush1.msra.mxu0 0.0
    %714 = vmatprep.subr.mxu0 0.0
    %715 = vmatpush1.msra.mxu0 0.0
    %716 = vmatprep.subr.mxu0 0.0
    %717 = vmatpush1.msra.mxu0 0.0
    %718 = vmatprep.subr.mxu0 0.0
    %719 = vmatpush1.msra.mxu0 0.0
    %720 = vmatprep.subr.mxu0 0.0
    %721 = vmatpush1.msra.mxu0 0.0
    %722 = vmatprep.subr.mxu0 0.0
    %723 = vmatpush1.msra.mxu0 0.0
    %724 = vmatprep.subr.mxu0 0.0
    %725 = vmatpush1.msra.mxu0 0.0
    %726 = vmatprep.subr.mxu0 0.0
    %727 = vmatpush1.msra.mxu0 0.0
    %728 = vmatprep.subr.mxu0 0.0
    %729 = vmatpush1.msra.mxu0 0.0
    %730 = vmatprep.subr.mxu0 0.0
    %731 = vmatpush1.msra.mxu0 0.0
    %732 = vmatprep.subr.mxu0 0.0
    %733 = vmatpush1.msra.mxu0 0.0
    %734 = vmatprep.subr.mxu0 0.0
    %735 = vmatpush1.msra.mxu0 0.0
    %736 = vmatprep.subr.mxu0 0.0
    %737 = vmatpush1.msra.mxu0 0.0
    %738 = vmatprep.subr.mxu0 0.0
    %739 = vmatpush1.msra.mxu0 0.0
    %740 = vmatprep.subr.mxu0 0.0
    %741 = vmatpush1.msra.mxu0 0.0
    %742 = vmatprep.mubr.f32.mxu0 0.0
    %743 = vmatmul.mubr.f32.gmra.mrb[0].mxu0 %v676
    %v744 = vpop.f32.mrb[0].mxu0
    %v745 = vadd.f32 %v28, %v744
    %v746 = vpop.f32.mrb[0].mxu0
    %747 = vdwg.mxu0
    %v749 = vrot.slane %v745, 3
    %v751 = vadd.f32 %v138, %v749
    %v752 = vxor.u32 %v751, 2147483648
    %v753 = vmul.f32 %v752, 1.442695
    %v754 = vpow.pop %v753
    %v755 = vadd.f32 %v754, 1.0
    %v756 = vrcp.pop %v755
    %v757 = vmul.f32 1.0, %v756
    %758 = vrot.lane.b32.xlu0 %v749, 64
    %v759 = vpop.permute.xlu0 %758
    %v761 = vmul.f32 %v757, %v759
    %763 = vrot.lane.b32.xlu0 %v761, 64
    %v764 = vpop.permute.xlu0 %763
    %v766 = vadd.f32 %v138, %v764
    %v767 = vtanh.pop %v766
    %v768 = vsub.f32 1.0, %v757
    %770 = vrot.lane.b32.xlu0 %v767, 96
    %v771 = vpop.permute.xlu0 %770
    %v773 = vmul.f32 %v768, %v771
    %v774 = vrot.slane %v669, 7
    %v776 = vmul.f32 %v757, %v774
    %v777 = vadd.f32 %v773, %v776
    %v779 = vrot.slane %v777, 5
    %v781 = vadd.f32 %v673, %v779
    %782 = vrot.lane.b32.xlu0 %v779, 96
    %v783 = vpop.permute.xlu0 %782
    %v784 = vsel %vm31, %v783, 0
    %786 = vmatprep.subr.mxu0 0.0
    %787 = vmatpush1.msra.mxu0 %v23
    %788 = vmatprep.subr.mxu0 0.0
    %789 = vmatpush1.msra.mxu0 %v24
    %790 = vmatprep.subr.mxu0 0.0
    %791 = vmatpush1.msra.mxu0 %v25
    %792 = vmatprep.subr.mxu0 0.0
    %793 = vmatpush1.msra.mxu0 %v26
    %794 = vmatprep.subr.mxu0 0.0
    %795 = vmatpush1.msra.mxu0 0.0
    %796 = vmatprep.subr.mxu0 0.0
    %797 = vmatpush1.msra.mxu0 0.0
    %798 = vmatprep.subr.mxu0 0.0
    %799 = vmatpush1.msra.mxu0 0.0
    %800 = vmatprep.subr.mxu0 0.0
    %801 = vmatpush1.msra.mxu0 0.0
    %802 = vmatprep.subr.mxu0 0.0
    %803 = vmatpush1.msra.mxu0 0.0
    %804 = vmatprep.subr.mxu0 0.0
    %805 = vmatpush1.msra.mxu0 0.0
    %806 = vmatprep.subr.mxu0 0.0
    %807 = vmatpush1.msra.mxu0 0.0
    %808 = vmatprep.subr.mxu0 0.0
    %809 = vmatpush1.msra.mxu0 0.0
    %810 = vmatprep.subr.mxu0 0.0
    %811 = vmatpush1.msra.mxu0 0.0
    %812 = vmatprep.subr.mxu0 0.0
    %813 = vmatpush1.msra.mxu0 0.0
    %814 = vmatprep.subr.mxu0 0.0
    %815 = vmatpush1.msra.mxu0 0.0
    %816 = vmatprep.subr.mxu0 0.0
    %817 = vmatpush1.msra.mxu0 0.0
    %818 = vmatprep.subr.mxu0 0.0
    %819 = vmatpush1.msra.mxu0 0.0
    %820 = vmatprep.subr.mxu0 0.0
    %821 = vmatpush1.msra.mxu0 0.0
    %822 = vmatprep.subr.mxu0 0.0
    %823 = vmatpush1.msra.mxu0 0.0
    %824 = vmatprep.subr.mxu0 0.0
    %825 = vmatpush1.msra.mxu0 0.0
    %826 = vmatprep.subr.mxu0 0.0
    %827 = vmatpush1.msra.mxu0 0.0
    %828 = vmatprep.subr.mxu0 0.0
    %829 = vmatpush1.msra.mxu0 0.0
    %830 = vmatprep.subr.mxu0 0.0
    %831 = vmatpush1.msra.mxu0 0.0
    %832 = vmatprep.subr.mxu0 0.0
    %833 = vmatpush1.msra.mxu0 0.0
    %834 = vmatprep.subr.mxu0 0.0
    %835 = vmatpush1.msra.mxu0 0.0
    %836 = vmatprep.subr.mxu0 0.0
    %837 = vmatpush1.msra.mxu0 0.0
    %838 = vmatprep.subr.mxu0 0.0
    %839 = vmatpush1.msra.mxu0 0.0
    %840 = vmatprep.subr.mxu0 0.0
    %841 = vmatpush1.msra.mxu0 0.0
    %842 = vmatprep.subr.mxu0 0.0
    %843 = vmatpush1.msra.mxu0 0.0
    %844 = vmatprep.subr.mxu0 0.0
    %845 = vmatpush1.msra.mxu0 0.0
    %846 = vmatprep.subr.mxu0 0.0
    %847 = vmatpush1.msra.mxu0 0.0
    %848 = vmatprep.subr.mxu0 0.0
    %849 = vmatpush1.msra.mxu0 0.0
    %850 = vmatprep.mubr.f32.mxu0 0.0
    %851 = vmatmul.mubr.f32.gmra.mrb[0].mxu0 %v784
    %v852 = vpop.f32.mrb[0].mxu0
    %v853 = vadd.f32 %v28, %v852
    %v854 = vpop.f32.mrb[0].mxu0
    %855 = vdwg.mxu0
    %v857 = vrot.slane %v853, 2
    %v859 = vadd.f32 %v138, %v857
    %v860 = vxor.u32 %v859, 2147483648
    %v861 = vmul.f32 %v860, 1.442695
    %v862 = vpow.pop %v861
    %v863 = vadd.f32 %v862, 1.0
    %v864 = vrcp.pop %v863
    %v865 = vmul.f32 1.0, %v864
    %866 = vrot.lane.b32.xlu0 %v857, 64
    %v867 = vpop.permute.xlu0 %866
    %v869 = vmul.f32 %v865, %v867
    %871 = vrot.lane.b32.xlu0 %v869, 64
    %v872 = vpop.permute.xlu0 %871
    %v874 = vadd.f32 %v138, %v872
    %v875 = vtanh.pop %v874
    %v876 = vsub.f32 1.0, %v865
    %878 = vrot.lane.b32.xlu0 %v875, 96
    %v879 = vpop.permute.xlu0 %878
    %v881 = vmul.f32 %v876, %v879
    %v882 = vrot.slane %v777, 7
    %v884 = vmul.f32 %v865, %v882
    %v885 = vadd.f32 %v881, %v884
    %v887 = vrot.slane %v885, 6
    %v889 = vadd.f32 %v781, %v887
    %890 = vrot.lane.b32.xlu0 %v887, 96
    %v891 = vpop.permute.xlu0 %890
    %v892 = vsel %vm31, %v891, 0
    %894 = vmatprep.subr.mxu0 0.0
    %895 = vmatpush1.msra.mxu0 %v23
    %896 = vmatprep.subr.mxu0 0.0
    %897 = vmatpush1.msra.mxu0 %v24
    %898 = vmatprep.subr.mxu0 0.0
    %899 = vmatpush1.msra.mxu0 %v25
    %900 = vmatprep.subr.mxu0 0.0
    %901 = vmatpush1.msra.mxu0 %v26
    %902 = vmatprep.subr.mxu0 0.0
    %903 = vmatpush1.msra.mxu0 0.0
    %904 = vmatprep.subr.mxu0 0.0
    %905 = vmatpush1.msra.mxu0 0.0
    %906 = vmatprep.subr.mxu0 0.0
    %907 = vmatpush1.msra.mxu0 0.0
    %908 = vmatprep.subr.mxu0 0.0
    %909 = vmatpush1.msra.mxu0 0.0
    %910 = vmatprep.subr.mxu0 0.0
    %911 = vmatpush1.msra.mxu0 0.0
    %912 = vmatprep.subr.mxu0 0.0
    %913 = vmatpush1.msra.mxu0 0.0
    %914 = vmatprep.subr.mxu0 0.0
    %915 = vmatpush1.msra.mxu0 0.0
    %916 = vmatprep.subr.mxu0 0.0
    %917 = vmatpush1.msra.mxu0 0.0
    %918 = vmatprep.subr.mxu0 0.0
    %919 = vmatpush1.msra.mxu0 0.0
    %920 = vmatprep.subr.mxu0 0.0
    %921 = vmatpush1.msra.mxu0 0.0
    %922 = vmatprep.subr.mxu0 0.0
    %923 = vmatpush1.msra.mxu0 0.0
    %924 = vmatprep.subr.mxu0 0.0
    %925 = vmatpush1.msra.mxu0 0.0
    %926 = vmatprep.subr.mxu0 0.0
    %927 = vmatpush1.msra.mxu0 0.0
    %928 = vmatprep.subr.mxu0 0.0
    %929 = vmatpush1.msra.mxu0 0.0
    %930 = vmatprep.subr.mxu0 0.0
    %931 = vmatpush1.msra.mxu0 0.0
    %932 = vmatprep.subr.mxu0 0.0
    %933 = vmatpush1.msra.mxu0 0.0
    %934 = vmatprep.subr.mxu0 0.0
    %935 = vmatpush1.msra.mxu0 0.0
    %936 = vmatprep.subr.mxu0 0.0
    %937 = vmatpush1.msra.mxu0 0.0
    %938 = vmatprep.subr.mxu0 0.0
    %939 = vmatpush1.msra.mxu0 0.0
    %940 = vmatprep.subr.mxu0 0.0
    %941 = vmatpush1.msra.mxu0 0.0
    %942 = vmatprep.subr.mxu0 0.0
    %943 = vmatpush1.msra.mxu0 0.0
    %944 = vmatprep.subr.mxu0 0.0
    %945 = vmatpush1.msra.mxu0 0.0
    %946 = vmatprep.subr.mxu0 0.0
    %947 = vmatpush1.msra.mxu0 0.0
    %948 = vmatprep.subr.mxu0 0.0
    %949 = vmatpush1.msra.mxu0 0.0
    %950 = vmatprep.subr.mxu0 0.0
    %951 = vmatpush1.msra.mxu0 0.0
    %952 = vmatprep.subr.mxu0 0.0
    %953 = vmatpush1.msra.mxu0 0.0
    %954 = vmatprep.subr.mxu0 0.0
    %955 = vmatpush1.msra.mxu0 0.0
    %956 = vmatprep.subr.mxu0 0.0
    %957 = vmatpush1.msra.mxu0 0.0
    %958 = vmatprep.mubr.f32.mxu0 0.0
    %959 = vmatmul.mubr.f32.gmra.mrb[0].mxu0 %v892
    %v960 = vpop.f32.mrb[0].mxu0
    %v961 = vadd.f32 %v28, %v960
    %v962 = vpop.f32.mrb[0].mxu0
    %963 = vdwg.mxu0
    %v965 = vrot.slane %v961, 1
    %v967 = vadd.f32 %v138, %v965
    %v968 = vxor.u32 %v967, 2147483648
    %v969 = vmul.f32 %v968, 1.442695
    %v970 = vpow.pop %v969
    %v971 = vadd.f32 %v970, 1.0
    %v972 = vrcp.pop %v971
    %v973 = vmul.f32 1.0, %v972
    %974 = vrot.lane.b32.xlu0 %v965, 64
    %v975 = vpop.permute.xlu0 %974
    %v977 = vmul.f32 %v973, %v975
    %979 = vrot.lane.b32.xlu0 %v977, 64
    %v980 = vpop.permute.xlu0 %979
    %v982 = vadd.f32 %v138, %v980
    %v983 = vtanh.pop %v982
    %v984 = vsub.f32 1.0, %v973
    %986 = vrot.lane.b32.xlu0 %v983, 96
    %v987 = vpop.permute.xlu0 %986
    %v989 = vmul.f32 %v984, %v987
    %v990 = vrot.slane %v885, 7
    %v992 = vmul.f32 %v973, %v990
    %v993 = vadd.f32 %v989, %v992
    %v995 = vrot.slane %v993, 7
    %v997 = vadd.f32 %v889, %v995
    %v998 = vmul.f32 %v997, 0.125
    %1000 = vrot.lane.b32.xlu0 %v998, 96
    %v1001 = vpop.permute.xlu0 %1000
    %vm1003 = vcmask 253952
    %1004 = vst.msk [vmem:[#allocation2] sm:$0x1] %vm1003, %v1001
    // Predicated region
    $region18: #{tree_rnn_encoder_forward_batched.1} parent=1 // pred_check
      _
    $region19: #{tree_rnn_encoder_forward_batched.1} parent=1 // pred_check_branch
      %1006 = sbr.rel (0) target = $region21
    $region20: #{tree_rnn_encoder_forward_batched.1} parent=1 // pred_region
      %s1008 = ssub.s32 16, 16
      %1009 = vsyncadd [#allocation3], %s1008
      %s1011 = sshll.u32 [#allocation2], 4
      %s1012 = int_to_ptr.vmem [resolvable:$true] %s1011
      %1014 = dma.vmem_to_hbm [thread:$0]  %s1012, 16, %s4, [#allocation3]
    $region21: #{tree_rnn_encoder_forward_batched.1} parent=1 // pred_fallthru
      _
    // Predicated region
    $region22: #{tree_rnn_encoder_forward_batched.1} parent=1 // pred_check
      _
    $region23: #{tree_rnn_encoder_forward_batched.1} parent=1 // pred_check_branch
      %1016 = sbr.rel (0) target = $region25
    $region24: #{tree_rnn_encoder_forward_batched.1} parent=1 // pred_region
      %1017 = dma.done [#allocation3], 16
    $region25: #{tree_rnn_encoder_forward_batched.1} parent=1 // pred_fallthru
      _
    %1018 = vsyncpa [#allocation3], 1

</llo_original>
